<compile_context>
chip_gen: v7x
topology: tpu7x:2x2x1
jax: 0.10.0
libtpu: 0.0.40
codegen_flags: <defaults>
</compile_context>

<pallas_src>
import numpy as np
import jax
import jax.numpy as jnp
from jax.experimental import pallas as pl
from jax.experimental.pallas import tpu as pltpu


# --------------------------------------------------------------------------
# Host-side (CPU/numpy) simple-point labeling, matching the PyTorch module's
# label_nonsimple_points / _is_nonsimple_point semantics.
# --------------------------------------------------------------------------
_STRUCT_6 = np.zeros((3, 3, 3), dtype=bool)          # scipy default (rank-1) connectivity
_STRUCT_6[1, 1, 1] = True
_STRUCT_6[0, 1, 1] = _STRUCT_6[2, 1, 1] = True
_STRUCT_6[1, 0, 1] = _STRUCT_6[1, 2, 1] = True
_STRUCT_6[1, 1, 0] = _STRUCT_6[1, 1, 2] = True
_STRUCT_26 = np.ones((3, 3, 3), dtype=bool)


def _connected_components(mask, structure):
    """Pure-numpy equivalent of scipy.ndimage.label(mask, structure)."""
    mask = np.asarray(mask, dtype=bool)
    offsets = [(dz - 1, dy - 1, dx - 1)
               for dz in range(3) for dy in range(3) for dx in range(3)
               if structure[dz, dy, dx] and not (dz == 1 and dy == 1 and dx == 1)]
    labels = np.zeros(mask.shape, dtype=np.int32)
    D, H, W = mask.shape
    cur = 0
    for z0 in range(D):
        for y0 in range(H):
            for x0 in range(W):
                if mask[z0, y0, x0] and labels[z0, y0, x0] == 0:
                    cur += 1
                    labels[z0, y0, x0] = cur
                    stack = [(z0, y0, x0)]
                    while stack:
                        cz, cy, cx = stack.pop()
                        for dz, dy, dx in offsets:
                            nz, ny, nx = cz + dz, cy + dy, cx + dx
                            if (0 <= nz < D and 0 <= ny < H and 0 <= nx < W
                                    and mask[nz, ny, nx] and labels[nz, ny, nx] == 0):
                                labels[nz, ny, nx] = cur
                                stack.append((nz, ny, nx))
    return labels, cur


def _is_nonsimple_point(neigh):
    if neigh[1, 1, 1] == 0:
        return False
    result = np.copy(neigh).astype(np.int64)
    center = result[1, 1, 1]
    result[result == 0] = -1
    _, n = _connected_components(result != center, _STRUCT_6)
    if n != 1:
        return True
    eq = (result == center)
    eq[1, 1, 1] = False
    _, n = _connected_components(eq, _STRUCT_26)
    if n != 1:
        return True
    return False


def label_nonsimple_points(array, threshold=0.0):
    binary = np.asarray(array) > threshold
    labeled, _ = _connected_components(binary, _STRUCT_6)
    D, H, W = labeled.shape
    padded = np.pad(labeled, (1,), 'edge')
    result = np.zeros((D, H, W), dtype=np.float32)
    for k in range(D):
        for j in range(H):
            for i in range(W):
                if _is_nonsimple_point(padded[k:k + 3, j:j + 3, i:i + 3]):
                    result[k, j, i] = 1.0
    return result


# --------------------------------------------------------------------------
# Pallas kernel: tiled, lane-dense weighted BCE-with-logits partial sums.
# --------------------------------------------------------------------------
_LANES = 128
_SUBLANES = 8
_ROW_ALIGN = 32          # int8 sublane tile (also a multiple of f32/bf16 tiles)
_MAX_TILE_ROWS = 4096    # (4096,128) f32 = 2 MiB logits + 0.5 MiB code per step


def _cdiv(a, b):
    return -(-a // b)


def _round_up(a, b):
    return _cdiv(a, b) * b


def _make_loss_kernel(simple_weight, non_simple_weight, tile_rows):
    sw = float(simple_weight)
    nsw = float(non_simple_weight)
    groups = tile_rows // _SUBLANES

    def kernel(pred_ref, code_ref, out_ref):
        x = pred_ref[...].astype(jnp.float32)     # widen bf16 logits in-kernel
        c = code_ref[...].astype(jnp.int32)       # int8 packed code -> int32
        m = c & 3                                 # 0 pad / 1 simple / 2 non-simple
        y = (c >> 2).astype(jnp.float32)          # label bit

        w = jnp.where(m == 2, nsw, jnp.where(m == 1, sw, 0.0))

        # BCEWithLogitsLoss(reduction='none'), numerically-stable form:
        #   max(x, 0) - x*y + log(1 + exp(-|x|))
        cost = jnp.maximum(x, 0.0) - x * y + jnp.log1p(jnp.exp(-jnp.abs(x)))

        # Select (not multiply) on the padding mask so garbage logits read in
        # the ragged last block can never contribute NaN/Inf.
        weighted = jnp.where(m == 0, 0.0, w * cost)

        # Per-tile (8,128) partial sums; lane-dense unmasked store and an
        # independent output block per grid step (grid axis stays "parallel").
        out_ref[...] = jnp.sum(
            weighted.reshape(groups, _SUBLANES, _LANES), axis=0)

    return kernel


def simple_point_bce_with_logits_loss(prediction, label, pred_nonsimple,
                                      label_nonsimple, simple_weight=1.0,
                                      non_simple_weight=1.0):
    n = int(np.prod(prediction.shape))
    rows = _cdiv(n, _LANES)

    # ---- tile selection (re-derived per volume) --------------------------
    if rows <= _ROW_ALIGN:
        # Tiny volume: one fully padded tile (device pad is negligible here).
        tile_rows = _ROW_ALIGN
        num_tiles = 1
        pred_rows = tile_rows
    else:
        # >= 2 grid steps when possible (both v7x TensorCores participate),
        # capped at _MAX_TILE_ROWS; always a multiple of 32 for the int8 code.
        tile_rows = min(_MAX_TILE_ROWS, _round_up(_cdiv(rows, 2), _ROW_ALIGN))
        num_tiles = _cdiv(rows, tile_rows)
        pred_rows = rows          # no row padding: ragged last block is masked
    code_rows = num_tiles * tile_rows

    # ---- prediction stream (only free reshape when numel % 128 == 0) -----
    keep_dtype = jnp.bfloat16 if prediction.dtype == jnp.bfloat16 else jnp.float32
    pred_flat = prediction.reshape(-1).astype(keep_dtype)
    pad = pred_rows * _LANES - n
    if pad:
        pred_flat = jnp.pad(pred_flat, (0, pad))
    p2 = pred_flat.reshape(pred_rows, _LANES)

    # ---- packed int8 code stream, built host-side (no device passes) -----
    # code = 0 padding, 1 simple, 2 non-simple; +4 if label == 1.
    label_f = np.asarray(label, dtype=np.float32).reshape(-1)
    nonsimple = ((np.asarray(pred_nonsimple, dtype=np.float32).reshape(-1)
                  + np.asarray(label_nonsimple, dtype=np.float32).reshape(-1)) > 0)
    body = np.ones(n, dtype=np.int8)
    body[nonsimple] = 2
    body[label_f > 0.5] += 4              # labels are binary {0,1} in this loss
    code = np.zeros(code_rows * _LANES, dtype=np.int8)
    code[:n] = body
    c2 = jnp.asarray(code.reshape(code_rows, _LANES))

    bytes_accessed = (p2.size * p2.dtype.itemsize + c2.size
                      + num_tiles * _SUBLANES * _LANES * 4)
    cost_est = pl.CostEstimate(flops=12 * n, transcendentals=2 * n,
                               bytes_accessed=bytes_accessed)

    partials = pl.pallas_call(
        _make_loss_kernel(simple_weight, non_simple_weight, tile_rows),
        out_shape=jax.ShapeDtypeStruct((num_tiles * _SUBLANES, _LANES),
                                       jnp.float32),
        grid=(num_tiles,),
        in_specs=[
            pl.BlockSpec((tile_rows, _LANES), lambda i: (i, 0)),
            pl.BlockSpec((tile_rows, _LANES), lambda i: (i, 0)),
        ],
        out_specs=pl.BlockSpec((_SUBLANES, _LANES), lambda i: (i, 0)),
        compiler_params=pltpu.CompilerParams(
            dimension_semantics=("parallel",),
            vmem_limit_bytes=32 * 1024 * 1024),
        cost_estimate=cost_est,
    )(p2, c2)

    # Final tiny reduction outside the kernel; divide by TRUE element count.
    return jnp.sum(partials) / n


# --------------------------------------------------------------------------
def _reference_loss(pred_np, label_np, pred_ns_np, label_ns_np, sw, nsw):
    w_bool = (pred_ns_np + label_ns_np) > 0
    weight = (w_bool.astype(np.float32) * nsw
              + (~w_bool).astype(np.float32) * sw)
    cost = (np.maximum(pred_np, 0.0) - pred_np * label_np
            + np.log1p(np.exp(-np.abs(pred_np))))
    return float((weight * cost).mean())


if __name__ == "__main__":
    key = jax.random.PRNGKey(0)
    k1, k2, k3, k4, k5, k6 = jax.random.split(key, 6)

    # ---- Test 1: small volume with true host-side simple-point labeling --
    D, H, W = 4, 8, 16
    SIMPLE_W, NON_SIMPLE_W = 1.0, 2.0

    prediction = jax.random.normal(k1, (D, H, W), dtype=jnp.float32)
    label = (jax.random.uniform(k2, (D, H, W)) > 0.5).astype(jnp.float32)

    pred_np = np.asarray(prediction)
    label_np = np.asarray(label)
    pred_ns = label_nonsimple_points(pred_np)        # host numpy, as in module
    label_ns = label_nonsimple_points(label_np)

    loss1 = simple_point_bce_with_logits_loss(
        prediction, label, pred_ns, label_ns,
        simple_weight=SIMPLE_W, non_simple_weight=NON_SIMPLE_W)
    loss1 = jax.block_until_ready(loss1)

    ref1 = _reference_loss(pred_np, label_np, np.asarray(pred_ns),
                           np.asarray(label_ns), SIMPLE_W, NON_SIMPLE_W)
    assert abs(float(loss1) - ref1) < 5e-5 * max(1.0, abs(ref1)), (float(loss1), ref1)

    # ---- Test 2: larger ragged volume (bf16 logits, multi-tile, partial
    #              last block) with synthetic non-simple masks ----------------
    D2, H2, W2 = 3, 50, 101
    SW2, NSW2 = 0.5, 3.0
    pred2 = jax.random.normal(k3, (D2, H2, W2), dtype=jnp.float32).astype(jnp.bfloat16)
    label2 = (jax.random.uniform(k4, (D2, H2, W2)) > 0.5).astype(jnp.float32)
    pred_ns2 = (jax.random.uniform(k5, (D2, H2, W2)) > 0.8).astype(jnp.float32)
    label_ns2 = (jax.random.uniform(k6, (D2, H2, W2)) > 0.8).astype(jnp.float32)

    loss2 = simple_point_bce_with_logits_loss(
        pred2, label2, pred_ns2, label_ns2,
        simple_weight=SW2, non_simple_weight=NSW2)
    loss2 = jax.block_until_ready(loss2)

    ref2 = _reference_loss(np.asarray(pred2).astype(np.float32),
                           np.asarray(label2), np.asarray(pred_ns2),
                           np.asarray(label_ns2), SW2, NSW2)
    assert abs(float(loss2) - ref2) < 5e-5 * max(1.0, abs(ref2)), (float(loss2), ref2)

    print("KERNEL_OK")
</pallas_src>

<mosaic_0001>
module attributes {stable_mosaic.version = 11 : i64} {
  func.func @kernel(%arg0: i32, %arg1: memref<32x128xf32, #tpu.memory_space<vmem>>, %arg2: memref<32x128xi8, #tpu.memory_space<vmem>>, %arg3: memref<8x128xf32, #tpu.memory_space<vmem>>) attributes {dimension_semantics = [#tpu.dimension_semantics<parallel>], iteration_bounds = array<i64: 1>, scalar_prefetch = 0 : i64, scratch_operands = 0 : i64, tpu.core_type = #tpu.core_type<tc>, window_params = [{transform_indices = @transform_0, window_bounds = array<i64: 32, 128>}, {transform_indices = @transform_1, window_bounds = array<i64: 32, 128>}, {transform_indices = @transform_2, window_bounds = array<i64: 8, 128>}]} {
    %c0 = arith.constant 0 : index
    %c0_0 = arith.constant 0 : index
    %0 = vector.load %arg1[%c0, %c0_0] : memref<32x128xf32, #tpu.memory_space<vmem>>, vector<32x128xf32>
    %c0_1 = arith.constant 0 : index
    %c0_2 = arith.constant 0 : index
    %1 = vector.load %arg2[%c0_1, %c0_2] : memref<32x128xi8, #tpu.memory_space<vmem>>, vector<32x128xi8>
    %2 = arith.extsi %1 : vector<32x128xi8> to vector<32x128xi32>
    %c3_i32 = arith.constant 3 : i32
    %3 = vector.broadcast %c3_i32 : i32 to vector<32x128xi32>
    %4 = arith.andi %2, %3 : vector<32x128xi32>
    %c2_i32 = arith.constant 2 : i32
    %5 = vector.broadcast %c2_i32 : i32 to vector<32x128xi32>
    %6 = arith.shrsi %2, %5 : vector<32x128xi32>
    %7 = arith.sitofp %6 : vector<32x128xi32> to vector<32x128xf32>
    %c2_i32_3 = arith.constant 2 : i32
    %8 = vector.broadcast %c2_i32_3 : i32 to vector<32x128xi32>
    %9 = arith.cmpi eq, %4, %8 : vector<32x128xi32>
    %c1_i32 = arith.constant 1 : i32
    %10 = vector.broadcast %c1_i32 : i32 to vector<32x128xi32>
    %11 = arith.cmpi eq, %4, %10 : vector<32x128xi32>
    %cst = arith.constant 1.000000e+00 : f32
    %cst_4 = arith.constant 0.000000e+00 : f32
    %12 = vector.broadcast %cst : f32 to vector<32x128xf32>
    %13 = vector.broadcast %cst_4 : f32 to vector<32x128xf32>
    %14 = arith.select %11, %12, %13 : vector<32x128xi1>, vector<32x128xf32>
    %cst_5 = arith.constant 2.000000e+00 : f32
    %15 = vector.broadcast %cst_5 : f32 to vector<32x128xf32>
    %16 = arith.select %9, %15, %14 : vector<32x128xi1>, vector<32x128xf32>
    %cst_6 = arith.constant 0.000000e+00 : f32
    %17 = vector.broadcast %cst_6 : f32 to vector<32x128xf32>
    %18 = arith.maximumf %0, %17 : vector<32x128xf32>
    %19 = arith.mulf %0, %7 : vector<32x128xf32>
    %20 = arith.subf %18, %19 : vector<32x128xf32>
    %21 = math.absf %0 : vector<32x128xf32>
    %cst_7 = arith.constant 0.000000e+00 : f32
    %22 = vector.broadcast %cst_7 : f32 to vector<32x128xf32>
    %23 = arith.subf %22, %21 : vector<32x128xf32>
    %24 = math.exp %23 : vector<32x128xf32>
    %25 = math.log1p %24 : vector<32x128xf32>
    %26 = arith.addf %20, %25 : vector<32x128xf32>
    %c0_i32 = arith.constant 0 : i32
    %27 = vector.broadcast %c0_i32 : i32 to vector<32x128xi32>
    %28 = arith.cmpi eq, %4, %27 : vector<32x128xi32>
    %29 = arith.mulf %16, %26 : vector<32x128xf32>
    %cst_8 = arith.constant 0.000000e+00 : f32
    %30 = vector.broadcast %cst_8 : f32 to vector<32x128xf32>
    %31 = arith.select %28, %30, %29 : vector<32x128xi1>, vector<32x128xf32>
    %32 = vector.shape_cast %31 : vector<32x128xf32> to vector<4x8x128xf32>
    %cst_9 = arith.constant dense<0.000000e+00> : vector<8x128xf32>
    %33 = vector.multi_reduction <add>, %32, %cst_9 [0] : vector<4x8x128xf32> to vector<8x128xf32>
    %c0_10 = arith.constant 0 : index
    %c0_11 = arith.constant 0 : index
    %34 = vector.load %arg3[%c0_10, %c0_11] : memref<8x128xf32, #tpu.memory_space<vmem>>, vector<8x128xf32>
    tpu.vector_store %arg3[%c0_10, %c0_11], %33 {strides = array<i32>} : memref<8x128xf32, #tpu.memory_space<vmem>>, vector<8x128xf32>,
    return
  }
  func.func @transform_0(%arg0: i32) -> (i32, i32) {
    %c0_i32 = arith.constant 0 : i32
    %c0_i32_0 = arith.constant 0 : i32
    return %arg0, %c0_i32 : i32, i32
  }
  func.func @transform_1(%arg0: i32) -> (i32, i32) {
    %c0_i32 = arith.constant 0 : i32
    %c0_i32_0 = arith.constant 0 : i32
    return %arg0, %c0_i32 : i32, i32
  }
  func.func @transform_2(%arg0: i32) -> (i32, i32) {
    %c0_i32 = arith.constant 0 : i32
    %c0_i32_0 = arith.constant 0 : i32
    return %arg0, %c0_i32 : i32, i32
  }
}

</mosaic_0001>

<llo_original>
// kernel: tpu_custom_call.1
$region0: #{tpu_custom_call.1}
  #allocation0 [shape = 'u32[]', space=smem, size = 0x4, offset = 0x4, fixed_abs, tag = 'smem constant byte address 0x4 - core index']
  #allocation1 [shape = 'u32[144,128]{1,0:T(1,128)}', space=vmem, size = 0x12000, scoped, tag = 'internal scratch']
  %s0 = inlined_call_operand.hbm [shape: f32[32,128], index: 0, kind: input, shape index: {}]
  %s1 = inlined_call_operand.hbm [shape: s8[32,128], index: 1, kind: input, shape index: {}]
  %s2 = inlined_call_operand.hbm [shape: f32[8,128], index: 2, kind: output, shape index: {}]
  %s3 = sld [smem:[#allocation0]]
  $region26: #{tpu_custom_call.1} parent=0
    _
  %s5 = ssub.s32 1, %s3
  %s6 = scalar_select 0, %s5, %s3
  $region1: #{tpu_custom_call.1} parent=0
    #allocation2 [shape = 'u8[16384]{0}', space=vmem, size = 0x4000, scoped, tag = 'input window, operand 0, single buffered']
    #allocation3 [shape = 's32[1]{0}', space=sflag, size = 0x4, scoped, tag = 'scoped memory for tpu_custom_call.1']
    #allocation4 [shape = 's32[1]{0}', space=sflag, size = 0x4, scoped, tag = 'scoped memory for tpu_custom_call.1']
    #allocation5 [shape = 'u8[4096]{0}', space=vmem, size = 0x1000, scoped, tag = 'input window, operand 1, single buffered']
    #allocation6 [shape = 's32[1]{0}', space=sflag, size = 0x4, scoped, tag = 'scoped memory for tpu_custom_call.1']
    #allocation7 [shape = 'u8[4096]{0}', space=vmem, size = 0x1000, scoped, tag = 'output window, operand 0, single buffered']
    %7 = vsyncpa [#allocation3], 0
    %8 = vsyncpa [#allocation6], 0
    %9 = vsyncpa [#allocation4], 0
    // Predicated region
    $region2: #{tpu_custom_call.1} parent=1 // pred_check
      _
    $region3: #{tpu_custom_call.1} parent=1 // pred_check_branch
      %11 = sbr.rel (0) target = $region5
    $region4: #{tpu_custom_call.1} parent=1 // pred_region
      %s13 = ssub.s32 512, 512
      %14 = vsyncadd [#allocation3], %s13
      %s15 = sshll.u32 [#allocation2], 4
      %s16 = int_to_ptr.vmem [resolvable:$true] %s15
      %21 = dma.hbm_to_vmem [thread:$0]  %s0, 512, %s16, [#allocation3], 128, 128, 8
    $region5: #{tpu_custom_call.1} parent=1 // pred_fallthru
      _
    // Predicated region
    $region6: #{tpu_custom_call.1} parent=1 // pred_check
      _
    $region7: #{tpu_custom_call.1} parent=1 // pred_check_branch
      %23 = sbr.rel (0) target = $region9
    $region8: #{tpu_custom_call.1} parent=1 // pred_region
      %s25 = ssub.s32 128, 128
      %26 = vsyncadd [#allocation6], %s25
      %s28 = sshll.u32 [#allocation5], 4
      %s29 = int_to_ptr.vmem [resolvable:$true] %s28
      %31 = dma.hbm_to_vmem [thread:$0]  %s1, 128, %s29, [#allocation6]
    $region9: #{tpu_custom_call.1} parent=1 // pred_fallthru
      _
    // Predicated region
    $region10: #{tpu_custom_call.1} parent=1 // pred_check
      _
    $region11: #{tpu_custom_call.1} parent=1 // pred_check_branch
      %33 = sbr.rel (0) target = $region13
    $region12: #{tpu_custom_call.1} parent=1 // pred_region
      %34 = dma.done [#allocation3], 512
    $region13: #{tpu_custom_call.1} parent=1 // pred_fallthru
      _
    // Predicated region
    $region14: #{tpu_custom_call.1} parent=1 // pred_check
      _
    $region15: #{tpu_custom_call.1} parent=1 // pred_check_branch
      %36 = sbr.rel (0) target = $region17
    $region16: #{tpu_custom_call.1} parent=1 // pred_region
      %37 = dma.done [#allocation6], 128
    $region17: #{tpu_custom_call.1} parent=1 // pred_fallthru
      _
    %v38 = vld [vmem:[#allocation2] sm:$0xff]
    %v39 = vld [vmem:[#allocation2 + $0x8] sm:$0xff]
    %v40 = vld [vmem:[#allocation2 + $0x10] sm:$0xff]
    %v41 = vld [vmem:[#allocation2 + $0x18] sm:$0xff]
    %v42 = vld [vmem:[#allocation5] sm:$0xff]
    %v43 = vunpack.c.0.s8 %v42
    %v44 = vunpack.c.1.s8 %v42
    %v45 = vunpack.c.2.s8 %v42
    %v46 = vunpack.c.3.s8 %v42
    %v47 = vand.u32 %v43, 3
    %v48 = vand.u32 %v44, 3
    %v49 = vand.u32 %v45, 3
    %v50 = vand.u32 %v46, 3
    %v51 = vshra.s32 %v43, 2
    %v52 = vshra.s32 %v44, 2
    %v53 = vshra.s32 %v45, 2
    %v54 = vshra.s32 %v46, 2
    %v55 = vcvt.s32.f32 %v51
    %v56 = vcvt.s32.f32 %v52
    %v57 = vcvt.s32.f32 %v53
    %v58 = vcvt.s32.f32 %v54
    %vm59 = vcmp.eq.s32.totalorder %v47, 2
    %vm60 = vcmp.eq.s32.totalorder %v48, 2
    %vm61 = vcmp.eq.s32.totalorder %v49, 2
    %vm62 = vcmp.eq.s32.totalorder %v50, 2
    %vm63 = vcmp.eq.s32.totalorder %v47, 1
    %vm64 = vcmp.eq.s32.totalorder %v48, 1
    %vm65 = vcmp.eq.s32.totalorder %v49, 1
    %vm66 = vcmp.eq.s32.totalorder %v50, 1
    %v67 = vsel %vm63, 1.0, 0.0
    %v68 = vsel %vm64, 1.0, 0.0
    %v69 = vsel %vm65, 1.0, 0.0
    %v70 = vsel %vm66, 1.0, 0.0
    %v71 = vsel %vm59, 2.0, %v67
    %v72 = vsel %vm60, 2.0, %v68
    %v73 = vsel %vm61, 2.0, %v69
    %v74 = vsel %vm62, 2.0, %v70
    %v75 = vmax.f32 %v38, 0.0
    %v76 = vmax.f32 %v39, 0.0
    %v77 = vmax.f32 %v40, 0.0
    %v78 = vmax.f32 %v41, 0.0
    %v79 = vmul.f32 %v38, %v55
    %v80 = vmul.f32 %v39, %v56
    %v81 = vmul.f32 %v40, %v57
    %v82 = vmul.f32 %v41, %v58
    %v83 = vsub.f32 %v75, %v79
    %v84 = vsub.f32 %v76, %v80
    %v85 = vsub.f32 %v77, %v81
    %v86 = vsub.f32 %v78, %v82
    %v87 = vand.u32 2147483647, %v38
    %v88 = vand.u32 2147483647, %v39
    %v89 = vand.u32 2147483647, %v40
    %v90 = vand.u32 2147483647, %v41
    %v91 = vsub.f32 0.0, %v87
    %v92 = vsub.f32 0.0, %v88
    %v93 = vsub.f32 0.0, %v89
    %v94 = vsub.f32 0.0, %v90
    %v95 = vmul.f32 %v91, 1.442695
    %v96 = vpow.pop %v95
    %v97 = vmul.f32 %v92, 1.442695
    %v98 = vpow.pop %v97
    %v99 = vmul.f32 %v93, 1.442695
    %v100 = vpow.pop %v99
    %v101 = vmul.f32 %v94, 1.442695
    %v102 = vpow.pop %v101
    %v103 = vadd.f32 %v96, 1.0
    %v104 = vlog2.pop %v103
    %v105 = vmul.f32 %v104, 0.6931472
    %v106 = vmul.f32 -0.5, %v96
    %v107 = vadd.f32 %v106, 1.0
    %v108 = vmul.f32 %v107, %v96
    %v109 = vand.u32 2147483647, %v96
    %vm110 = vcmp.lt.f32.partialorder %v109, 0.0004427343
    %v111 = vsel %vm110, %v108, %v105
    %v112 = vadd.f32 %v98, 1.0
    %v113 = vlog2.pop %v112
    %v114 = vmul.f32 %v113, 0.6931472
    %v115 = vmul.f32 -0.5, %v98
    %v116 = vadd.f32 %v115, 1.0
    %v117 = vmul.f32 %v116, %v98
    %v118 = vand.u32 2147483647, %v98
    %vm119 = vcmp.lt.f32.partialorder %v118, 0.0004427343
    %v120 = vsel %vm119, %v117, %v114
    %v121 = vadd.f32 %v100, 1.0
    %v122 = vlog2.pop %v121
    %v123 = vmul.f32 %v122, 0.6931472
    %v124 = vmul.f32 -0.5, %v100
    %v125 = vadd.f32 %v124, 1.0
    %v126 = vmul.f32 %v125, %v100
    %v127 = vand.u32 2147483647, %v100
    %vm128 = vcmp.lt.f32.partialorder %v127, 0.0004427343
    %v129 = vsel %vm128, %v126, %v123
    %v130 = vadd.f32 %v102, 1.0
    %v131 = vlog2.pop %v130
    %v132 = vmul.f32 %v131, 0.6931472
    %v133 = vmul.f32 -0.5, %v102
    %v134 = vadd.f32 %v133, 1.0
    %v135 = vmul.f32 %v134, %v102
    %v136 = vand.u32 2147483647, %v102
    %vm137 = vcmp.lt.f32.partialorder %v136, 0.0004427343
    %v138 = vsel %vm137, %v135, %v132
    %v139 = vadd.f32 %v83, %v111
    %v140 = vadd.f32 %v84, %v120
    %v141 = vadd.f32 %v85, %v129
    %v142 = vadd.f32 %v86, %v138
    %vm143 = vcmp.eq.s32.totalorder %v47, 0
    %vm144 = vcmp.eq.s32.totalorder %v48, 0
    %vm145 = vcmp.eq.s32.totalorder %v49, 0
    %vm146 = vcmp.eq.s32.totalorder %v50, 0
    %v147 = vmul.f32 %v71, %v139
    %v148 = vmul.f32 %v72, %v140
    %v149 = vmul.f32 %v73, %v141
    %v150 = vmul.f32 %v74, %v142
    %v151 = vsel %vm143, 0.0, %v147
    %v152 = vsel %vm144, 0.0, %v148
    %v153 = vsel %vm145, 0.0, %v149
    %v154 = vsel %vm146, 0.0, %v150
    %v155 = vadd.f32 %v151, %v152
    %v156 = vadd.f32 %v155, %v153
    %v157 = vadd.f32 %v156, %v154
    %158 = vst [vmem:[#allocation7] sm:$0xff] %v157
    // Predicated region
    $region18: #{tpu_custom_call.1} parent=1 // pred_check
      _
    $region19: #{tpu_custom_call.1} parent=1 // pred_check_branch
      %160 = sbr.rel (0) target = $region21
    $region20: #{tpu_custom_call.1} parent=1 // pred_region
      %s162 = ssub.s32 128, 128
      %163 = vsyncadd [#allocation4], %s162
      %s165 = sshll.u32 [#allocation7], 4
      %s166 = int_to_ptr.vmem [resolvable:$true] %s165
      %168 = dma.vmem_to_hbm [thread:$0]  %s166, 128, %s2, [#allocation4]
    $region21: #{tpu_custom_call.1} parent=1 // pred_fallthru
      _
    // Predicated region
    $region22: #{tpu_custom_call.1} parent=1 // pred_check
      _
    $region23: #{tpu_custom_call.1} parent=1 // pred_check_branch
      %170 = sbr.rel (0) target = $region25
    $region24: #{tpu_custom_call.1} parent=1 // pred_region
      %171 = dma.done [#allocation4], 128
    $region25: #{tpu_custom_call.1} parent=1 // pred_fallthru
      _
    %172 = vsyncpa [#allocation3], 1
    %173 = vsyncpa [#allocation6], 1
    %174 = vsyncpa [#allocation4], 1

</llo_original>
